<compile_context>
chip_gen: v7x
topology: tpu7x:2x2x1
jax: 0.10.0
libtpu: 0.0.40
codegen_flags: <defaults>
</compile_context>

<pallas_src>
import functools

import jax
import jax.numpy as jnp
from jax import lax
from jax.experimental import pallas as pl
from jax.experimental.pallas import tpu as pltpu


def _mha_fused_kernel(x_ref, w_ref, o_ref, *, num_heads, head_size):
    # x_ref: (1, T, C)     -- one batch element, full sequence, full embed
    # w_ref: (C, 3*NH*H)   -- stacked [Wq*scale | Wk | Wv] for all heads (VMEM-resident)
    # o_ref: (1, T, NH*H)  -- concatenated per-head outputs for this batch element
    x = x_ref[0]                       # (T, C) f32
    w = w_ref[...]                     # (C, 3*NH*H) f32
    T, _ = x.shape
    NH, H = num_heads, head_size

    # Single fused QKV projection: one wide MXU matmul (N = 3*NH*H lanes)
    # instead of 3*NH narrow (N = H) ones.  The attention scale is already
    # folded into the Q columns of w.
    qkv = jnp.dot(x, w, preferred_element_type=jnp.float32)   # (T, 3*NH*H)

    # Causal mask (shared across heads), built once per grid step.
    row = lax.broadcasted_iota(jnp.int32, (T, T), 0)
    col = lax.broadcasted_iota(jnp.int32, (T, T), 1)
    causal = col <= row
    neg_inf = jnp.float32(-jnp.inf)

    outs = []
    for h in range(NH):                # static unroll; NH is small here
        q = qkv[:, h * H:(h + 1) * H]                                      # (T, H), pre-scaled
        k = qkv[:, NH * H + h * H: NH * H + (h + 1) * H]                   # (T, H)
        v = qkv[:, 2 * NH * H + h * H: 2 * NH * H + (h + 1) * H]           # (T, H)

        # q @ k.T without an explicit transpose: contract the last dims.
        wei = lax.dot_general(q, k, (((1,), (1,)), ((), ())),
                              preferred_element_type=jnp.float32)          # (T, T)
        wei = jnp.where(causal, wei, neg_inf)

        # Numerically-stable softmax numerator; normalization is deferred
        # until after the p@v matmul (same math, fewer VPU muls).
        m = jnp.max(wei, axis=-1, keepdims=True)                           # finite (diag unmasked)
        e = jnp.exp(wei - m)                                               # (T, T)
        s = jnp.sum(e, axis=-1, keepdims=True)                             # (T, 1)

        o_h = jnp.dot(e, v, preferred_element_type=jnp.float32)            # (T, H)
        outs.append(o_h * pl.reciprocal(s, approx=True))                   # divide on the EUP

    # Lane-dense concatenated output: one full-block store.
    o_ref[0] = jnp.concatenate(outs, axis=-1).astype(o_ref.dtype)


def multi_head_attention(x, wq, wk, wv):
    """x: (B, T, C); wq/wk/wv: (num_heads, C, head_size) (pre-transposed
    nn.Linear weights, stacked per head).

    Returns (B, T, num_heads * head_size), matching
    torch.cat([h(x) for h in heads], dim=-1).
    """
    B, T, C = x.shape
    NH, C2, H = wq.shape
    assert C2 == C

    # One-time weight packing (in a real model this is done once at init):
    # (NH, C, H) -> (C, NH*H) for each of q/k/v, concatenated to (C, 3*NH*H).
    # nanogpt scales attention by n_embed**-0.5 (NOT head_size**-0.5); fold it
    # into the Q weights so the kernel does zero extra muls for it.
    def _flat(w):
        return jnp.transpose(w, (1, 0, 2)).reshape(C, NH * H)

    scale = jnp.asarray(C, jnp.float32) ** jnp.float32(-0.5)
    w_qkv = jnp.concatenate([_flat(wq) * scale, _flat(wk), _flat(wv)], axis=-1)

    kernel = functools.partial(_mha_fused_kernel, num_heads=NH, head_size=H)

    return pl.pallas_call(
        kernel,
        out_shape=jax.ShapeDtypeStruct((B, T, NH * H), x.dtype),
        grid_spec=pltpu.PrefetchScalarGridSpec(
            num_scalar_prefetch=0,
            grid=(B,),
            in_specs=[
                pl.BlockSpec((1, T, C), lambda b: (b, 0, 0)),
                # Constant index_map -> weights stay resident in VMEM across
                # the whole grid (no per-step re-DMA).
                pl.BlockSpec((C, 3 * NH * H), lambda b: (0, 0)),
            ],
            out_specs=pl.BlockSpec((1, T, NH * H), lambda b: (b, 0, 0)),
        ),
        compiler_params=pltpu.CompilerParams(
            dimension_semantics=("parallel",),
        ),
    )(x, w_qkv)


def _reference(x, wq, wk, wv):
    """Plain-JAX reference mirroring the PyTorch module, for validation."""
    B, T, C = x.shape
    outs = []
    for h in range(wq.shape[0]):
        q = x @ wq[h]
        k = x @ wk[h]
        v = x @ wv[h]
        wei = (q @ jnp.swapaxes(k, -2, -1)) * (C ** -0.5)
        mask = jnp.tril(jnp.ones((T, T), dtype=bool))
        wei = jnp.where(mask, wei, -jnp.inf)
        wei = jax.nn.softmax(wei, axis=-1)
        outs.append(wei @ v)
    return jnp.concatenate(outs, axis=-1)


if __name__ == "__main__":
    # Small, module-consistent shapes: n_embed=32, num_heads=4, head_size=8,
    # block_size = T = 8, batch = 2.
    B, T, C = 2, 8, 32
    NUM_HEADS, HEAD_SIZE = 4, 8

    key = jax.random.PRNGKey(0)
    kx, kq, kk, kv = jax.random.split(key, 4)

    x = jax.random.normal(kx, (B, T, C), dtype=jnp.float32)
    # nn.Linear(n_embed, head_size, bias=False) weight is (head_size, n_embed);
    # we generate the transposed (n_embed, head_size) form directly, per head.
    wq = jax.random.normal(kq, (NUM_HEADS, C, HEAD_SIZE), dtype=jnp.float32) * 0.1
    wk = jax.random.normal(kk, (NUM_HEADS, C, HEAD_SIZE), dtype=jnp.float32) * 0.1
    wv = jax.random.normal(kv, (NUM_HEADS, C, HEAD_SIZE), dtype=jnp.float32) * 0.1

    out = multi_head_attention(x, wq, wk, wv)
    out = jax.block_until_ready(out)

    ref = _reference(x, wq, wk, wv)
    assert out.shape == (B, T, NUM_HEADS * HEAD_SIZE), out.shape
    # Tolerance loosened slightly for the EUP approximate reciprocal in softmax
    # and the folded attention scale.
    assert jnp.allclose(out, ref, atol=5e-3, rtol=5e-3), "mismatch vs reference"

    print("KERNEL_OK")
</pallas_src>

<mosaic_0001>
module attributes {stable_mosaic.version = 11 : i64} {
  func.func @_mha_fused_kernel(%arg0: i32, %arg1: memref<1x8x32xf32, #tpu.memory_space<vmem>>, %arg2: memref<32x96xf32, #tpu.memory_space<vmem>>, %arg3: memref<1x8x32xf32, #tpu.memory_space<vmem>>) attributes {dimension_semantics = [#tpu.dimension_semantics<parallel>], iteration_bounds = array<i64: 2>, scalar_prefetch = 0 : i64, scratch_operands = 0 : i64, tpu.core_type = #tpu.core_type<tc>, window_params = [{transform_indices = @transform_0, window_bounds = array<i64: 1, 8, 32>}, {pipeline_mode = #tpu.pipeline_mode<synchronous>, transform_indices = @transform_1, window_bounds = array<i64: 32, 96>}, {transform_indices = @transform_2, window_bounds = array<i64: 1, 8, 32>}]} {
    %c0 = arith.constant 0 : index
    %c0_0 = arith.constant 0 : index
    %c0_1 = arith.constant 0 : index
    %0 = vector.load %arg1[%c0, %c0_0, %c0_1] : memref<1x8x32xf32, #tpu.memory_space<vmem>>, vector<1x8x32xf32>
    %1 = vector.shape_cast %0 : vector<1x8x32xf32> to vector<8x32xf32>
    %c0_2 = arith.constant 0 : index
    %c0_3 = arith.constant 0 : index
    %2 = vector.load %arg2[%c0_2, %c0_3] : memref<32x96xf32, #tpu.memory_space<vmem>>, vector<32x96xf32>
    %cst = arith.constant dense<0.000000e+00> : vector<8x96xf32>
    %3 = tpu.matmul %1, %2, %cst {dimension_numbers = #tpu.dot_dimension_numbers<[1], [0], [0], [1], [0, 0, 1, 1], [], []>} : vector<8x32xf32>, vector<32x96xf32>, vector<8x96xf32> -> vector<8x96xf32>
    %4 = tpu.iota {dimensions = array<i32: 0>} : vector<8x8xi32>
    %5 = tpu.iota {dimensions = array<i32: 1>} : vector<8x8xi32>
    %6 = arith.cmpi sle, %5, %4 : vector<8x8xi32>
    %7 = vector.extract_strided_slice %3 {offsets = [0, 0], sizes = [8, 8], strides = [1, 1]} : vector<8x96xf32> to vector<8x8xf32>
    %8 = vector.extract_strided_slice %3 {offsets = [0, 32], sizes = [8, 8], strides = [1, 1]} : vector<8x96xf32> to vector<8x8xf32>
    %9 = vector.extract_strided_slice %3 {offsets = [0, 64], sizes = [8, 8], strides = [1, 1]} : vector<8x96xf32> to vector<8x8xf32>
    %cst_4 = arith.constant dense<0.000000e+00> : vector<8x8xf32>
    %10 = tpu.matmul %7, %8, %cst_4 {dimension_numbers = #tpu.dot_dimension_numbers<[1], [1], [0], [0], [0, 0, 1, 0], [], []>} : vector<8x8xf32>, vector<8x8xf32>, vector<8x8xf32> -> vector<8x8xf32>
    %cst_5 = arith.constant 0xFF800000 : f32
    %11 = vector.broadcast %cst_5 : f32 to vector<8x8xf32>
    %12 = arith.select %6, %10, %11 : vector<8x8xi1>, vector<8x8xf32>
    %cst_6 = arith.constant dense<0xFF800000> : vector<8xf32>
    %13 = vector.multi_reduction <maximumf>, %12, %cst_6 [1] : vector<8x8xf32> to vector<8xf32>
    %14 = vector.shape_cast %13 : vector<8xf32> to vector<8x1xf32>
    %15 = vector.broadcast %14 : vector<8x1xf32> to vector<8x8xf32>
    %16 = arith.subf %12, %15 : vector<8x8xf32>
    %17 = math.exp %16 : vector<8x8xf32>
    %cst_7 = arith.constant dense<0.000000e+00> : vector<8xf32>
    %18 = vector.multi_reduction <add>, %17, %cst_7 [1] : vector<8x8xf32> to vector<8xf32>
    %19 = vector.shape_cast %18 : vector<8xf32> to vector<8x1xf32>
    %cst_8 = arith.constant dense<0.000000e+00> : vector<8x8xf32>
    %20 = tpu.matmul %17, %9, %cst_8 {dimension_numbers = #tpu.dot_dimension_numbers<[1], [0], [0], [1], [0, 0, 1, 1], [], []>} : vector<8x8xf32>, vector<8x8xf32>, vector<8x8xf32> -> vector<8x8xf32>
    %21 = tpu.reciprocal %19 {approx = true} : vector<8x1xf32> -> vector<8x1xf32>
    %22 = vector.broadcast %21 : vector<8x1xf32> to vector<8x8xf32>
    %23 = arith.mulf %20, %22 : vector<8x8xf32>
    %24 = vector.extract_strided_slice %3 {offsets = [0, 8], sizes = [8, 8], strides = [1, 1]} : vector<8x96xf32> to vector<8x8xf32>
    %25 = vector.extract_strided_slice %3 {offsets = [0, 40], sizes = [8, 8], strides = [1, 1]} : vector<8x96xf32> to vector<8x8xf32>
    %26 = vector.extract_strided_slice %3 {offsets = [0, 72], sizes = [8, 8], strides = [1, 1]} : vector<8x96xf32> to vector<8x8xf32>
    %cst_9 = arith.constant dense<0.000000e+00> : vector<8x8xf32>
    %27 = tpu.matmul %24, %25, %cst_9 {dimension_numbers = #tpu.dot_dimension_numbers<[1], [1], [0], [0], [0, 0, 1, 0], [], []>} : vector<8x8xf32>, vector<8x8xf32>, vector<8x8xf32> -> vector<8x8xf32>
    %cst_10 = arith.constant 0xFF800000 : f32
    %28 = vector.broadcast %cst_10 : f32 to vector<8x8xf32>
    %29 = arith.select %6, %27, %28 : vector<8x8xi1>, vector<8x8xf32>
    %cst_11 = arith.constant dense<0xFF800000> : vector<8xf32>
    %30 = vector.multi_reduction <maximumf>, %29, %cst_11 [1] : vector<8x8xf32> to vector<8xf32>
    %31 = vector.shape_cast %30 : vector<8xf32> to vector<8x1xf32>
    %32 = vector.broadcast %31 : vector<8x1xf32> to vector<8x8xf32>
    %33 = arith.subf %29, %32 : vector<8x8xf32>
    %34 = math.exp %33 : vector<8x8xf32>
    %cst_12 = arith.constant dense<0.000000e+00> : vector<8xf32>
    %35 = vector.multi_reduction <add>, %34, %cst_12 [1] : vector<8x8xf32> to vector<8xf32>
    %36 = vector.shape_cast %35 : vector<8xf32> to vector<8x1xf32>
    %cst_13 = arith.constant dense<0.000000e+00> : vector<8x8xf32>
    %37 = tpu.matmul %34, %26, %cst_13 {dimension_numbers = #tpu.dot_dimension_numbers<[1], [0], [0], [1], [0, 0, 1, 1], [], []>} : vector<8x8xf32>, vector<8x8xf32>, vector<8x8xf32> -> vector<8x8xf32>
    %38 = tpu.reciprocal %36 {approx = true} : vector<8x1xf32> -> vector<8x1xf32>
    %39 = vector.broadcast %38 : vector<8x1xf32> to vector<8x8xf32>
    %40 = arith.mulf %37, %39 : vector<8x8xf32>
    %41 = vector.extract_strided_slice %3 {offsets = [0, 16], sizes = [8, 8], strides = [1, 1]} : vector<8x96xf32> to vector<8x8xf32>
    %42 = vector.extract_strided_slice %3 {offsets = [0, 48], sizes = [8, 8], strides = [1, 1]} : vector<8x96xf32> to vector<8x8xf32>
    %43 = vector.extract_strided_slice %3 {offsets = [0, 80], sizes = [8, 8], strides = [1, 1]} : vector<8x96xf32> to vector<8x8xf32>
    %cst_14 = arith.constant dense<0.000000e+00> : vector<8x8xf32>
    %44 = tpu.matmul %41, %42, %cst_14 {dimension_numbers = #tpu.dot_dimension_numbers<[1], [1], [0], [0], [0, 0, 1, 0], [], []>} : vector<8x8xf32>, vector<8x8xf32>, vector<8x8xf32> -> vector<8x8xf32>
    %cst_15 = arith.constant 0xFF800000 : f32
    %45 = vector.broadcast %cst_15 : f32 to vector<8x8xf32>
    %46 = arith.select %6, %44, %45 : vector<8x8xi1>, vector<8x8xf32>
    %cst_16 = arith.constant dense<0xFF800000> : vector<8xf32>
    %47 = vector.multi_reduction <maximumf>, %46, %cst_16 [1] : vector<8x8xf32> to vector<8xf32>
    %48 = vector.shape_cast %47 : vector<8xf32> to vector<8x1xf32>
    %49 = vector.broadcast %48 : vector<8x1xf32> to vector<8x8xf32>
    %50 = arith.subf %46, %49 : vector<8x8xf32>
    %51 = math.exp %50 : vector<8x8xf32>
    %cst_17 = arith.constant dense<0.000000e+00> : vector<8xf32>
    %52 = vector.multi_reduction <add>, %51, %cst_17 [1] : vector<8x8xf32> to vector<8xf32>
    %53 = vector.shape_cast %52 : vector<8xf32> to vector<8x1xf32>
    %cst_18 = arith.constant dense<0.000000e+00> : vector<8x8xf32>
    %54 = tpu.matmul %51, %43, %cst_18 {dimension_numbers = #tpu.dot_dimension_numbers<[1], [0], [0], [1], [0, 0, 1, 1], [], []>} : vector<8x8xf32>, vector<8x8xf32>, vector<8x8xf32> -> vector<8x8xf32>
    %55 = tpu.reciprocal %53 {approx = true} : vector<8x1xf32> -> vector<8x1xf32>
    %56 = vector.broadcast %55 : vector<8x1xf32> to vector<8x8xf32>
    %57 = arith.mulf %54, %56 : vector<8x8xf32>
    %58 = vector.extract_strided_slice %3 {offsets = [0, 24], sizes = [8, 8], strides = [1, 1]} : vector<8x96xf32> to vector<8x8xf32>
    %59 = vector.extract_strided_slice %3 {offsets = [0, 56], sizes = [8, 8], strides = [1, 1]} : vector<8x96xf32> to vector<8x8xf32>
    %60 = vector.extract_strided_slice %3 {offsets = [0, 88], sizes = [8, 8], strides = [1, 1]} : vector<8x96xf32> to vector<8x8xf32>
    %cst_19 = arith.constant dense<0.000000e+00> : vector<8x8xf32>
    %61 = tpu.matmul %58, %59, %cst_19 {dimension_numbers = #tpu.dot_dimension_numbers<[1], [1], [0], [0], [0, 0, 1, 0], [], []>} : vector<8x8xf32>, vector<8x8xf32>, vector<8x8xf32> -> vector<8x8xf32>
    %cst_20 = arith.constant 0xFF800000 : f32
    %62 = vector.broadcast %cst_20 : f32 to vector<8x8xf32>
    %63 = arith.select %6, %61, %62 : vector<8x8xi1>, vector<8x8xf32>
    %cst_21 = arith.constant dense<0xFF800000> : vector<8xf32>
    %64 = vector.multi_reduction <maximumf>, %63, %cst_21 [1] : vector<8x8xf32> to vector<8xf32>
    %65 = vector.shape_cast %64 : vector<8xf32> to vector<8x1xf32>
    %66 = vector.broadcast %65 : vector<8x1xf32> to vector<8x8xf32>
    %67 = arith.subf %63, %66 : vector<8x8xf32>
    %68 = math.exp %67 : vector<8x8xf32>
    %cst_22 = arith.constant dense<0.000000e+00> : vector<8xf32>
    %69 = vector.multi_reduction <add>, %68, %cst_22 [1] : vector<8x8xf32> to vector<8xf32>
    %70 = vector.shape_cast %69 : vector<8xf32> to vector<8x1xf32>
    %cst_23 = arith.constant dense<0.000000e+00> : vector<8x8xf32>
    %71 = tpu.matmul %68, %60, %cst_23 {dimension_numbers = #tpu.dot_dimension_numbers<[1], [0], [0], [1], [0, 0, 1, 1], [], []>} : vector<8x8xf32>, vector<8x8xf32>, vector<8x8xf32> -> vector<8x8xf32>
    %72 = tpu.reciprocal %70 {approx = true} : vector<8x1xf32> -> vector<8x1xf32>
    %73 = vector.broadcast %72 : vector<8x1xf32> to vector<8x8xf32>
    %74 = arith.mulf %71, %73 : vector<8x8xf32>
    %75 = tpu.concatenate %23, %40, %57, %74 in 1 : vector<8x8xf32>, vector<8x8xf32>, vector<8x8xf32>, vector<8x8xf32> -> vector<8x32xf32>
    %c0_24 = arith.constant 0 : index
    %c0_25 = arith.constant 0 : index
    %c0_26 = arith.constant 0 : index
    %76 = vector.load %arg3[%c0_24, %c0_25, %c0_26] : memref<1x8x32xf32, #tpu.memory_space<vmem>>, vector<1x8x32xf32>
    %77 = vector.shape_cast %76 : vector<1x8x32xf32> to vector<8x32xf32>
    %78 = vector.shape_cast %75 : vector<8x32xf32> to vector<1x8x32xf32>
    tpu.vector_store %arg3[%c0_24, %c0_25, %c0_26], %78 {strides = array<i32>} : memref<1x8x32xf32, #tpu.memory_space<vmem>>, vector<1x8x32xf32>,
    return
  }
  func.func @transform_0(%arg0: i32) -> (i32, i32, i32) {
    %c0_i32 = arith.constant 0 : i32
    %c0_i32_0 = arith.constant 0 : i32
    %c0_i32_1 = arith.constant 0 : i32
    return %arg0, %c0_i32, %c0_i32_0 : i32, i32, i32
  }
  func.func @transform_1(%arg0: i32) -> (i32, i32) {
    %c0_i32 = arith.constant 0 : i32
    %c0_i32_0 = arith.constant 0 : i32
    %c0_i32_1 = arith.constant 0 : i32
    return %c0_i32, %c0_i32_0 : i32, i32
  }
  func.func @transform_2(%arg0: i32) -> (i32, i32, i32) {
    %c0_i32 = arith.constant 0 : i32
    %c0_i32_0 = arith.constant 0 : i32
    %c0_i32_1 = arith.constant 0 : i32
    return %arg0, %c0_i32, %c0_i32_0 : i32, i32, i32
  }
}

</mosaic_0001>

<llo_original>
// kernel: tpu_custom_call.1
$region0: #{tpu_custom_call.1}
  #allocation0 [shape = 'u32[]', space=smem, size = 0x4, offset = 0x4, fixed_abs, tag = 'smem constant byte address 0x4 - core index']
  #allocation1 [shape = 'u32[144,128]{1,0:T(1,128)}', space=vmem, size = 0x12000, scoped, tag = 'internal scratch']
  %s0 = inlined_call_operand.hbm [shape: f32[2,8,32], index: 0, kind: input, shape index: {}]
  %s1 = inlined_call_operand.hbm [shape: f32[32,96], index: 1, kind: input, shape index: {}]
  %s2 = inlined_call_operand.hbm [shape: f32[2,8,32], index: 2, kind: output, shape index: {}]
  %s3 = sld [smem:[#allocation0]]
  $region49: #{tpu_custom_call.1} parent=0
    _
  %s5 = ssub.s32 1, %s3
  %s6 = scalar_select 0, %s5, %s3
  $region1: #{tpu_custom_call.1} parent=0
    #allocation2 [shape = 'u8[8192]{0}', space=vmem, size = 0x2000, scoped, tag = 'input window, operand 0']
    #allocation3 [shape = 's32[2]{0}', space=sflag, size = 0x8, scoped, tag = 'scoped memory for tpu_custom_call.1']
    #allocation4 [shape = 's32[2]{0}', space=sflag, size = 0x8, scoped, tag = 'scoped memory for tpu_custom_call.1']
    #allocation5 [shape = 'u8[16384]{0}', space=vmem, size = 0x4000, scoped, tag = 'input window, operand 1, single buffered']
    #allocation6 [shape = 's32[1]{0}', space=sflag, size = 0x4, scoped, tag = 'scoped memory for tpu_custom_call.1']
    #allocation7 [shape = 'u8[8192]{0}', space=vmem, size = 0x2000, scoped, tag = 'output window, operand 0']
    %7 = vsyncpa [#allocation3], 0
    %s8 = scalar_lea.sflag [#allocation3], 1
    %9 = vsyncpa %s8, 0
    %10 = vsyncpa [#allocation6], 0
    %11 = vsyncpa [#allocation4], 0
    %s12 = scalar_lea.sflag [#allocation4], 1
    %13 = vsyncpa %s12, 0
    loop: start=0, step=1, limit=4
    $region2: #{tpu_custom_call.1} parent=1 // loop_pre_header
      _
    $region3: #{tpu_custom_call.1} parent=1 // loop_header
      %s15 = sphi 0, %s19
      %p16 = scmp.ge.s32.totalorder %s15, 4
      %s25 = sphi 0, %s27
      %s28 = sphi 0, %s25
      %s29 = sphi 0, %s28
      %s45 = sphi 0, %s29
      %s49 = sphi 0, %s49
      %s51 = sphi 0, %s49
      %s52 = sphi 0, %s51
      %s66 = sphi 0, %s52
      %s72 = sphi 0, %s74
      %s75 = sphi 0, %s72
      %s76 = sphi 0, %s75
      %s92 = sphi 0, %s76
    $region4: #{tpu_custom_call.1} parent=1 // loop_header_branch
      %18 = sbr.rel (%p16) target = $region8
    $region5: #{tpu_custom_call.1} parent=1 // loop_body
      %s20 = ssub.s32 %s15, 1
      %s21 = ssub.s32 %s15, 2
      %s22 = sadd.s32 %s15, 1
      %s23 = ssub.s32 %s15, %s22
      %p24 = scmp.eq.s32.totalorder %s23, 0
      %s26 = sadd.s32 %s25, 1
      %s27 = scalar_select %p24, %s25, %s26
      %p30 = pneg %p24
      %p31 = scmp.eq.s32.totalorder %s15, 1
      %p32 = por %p30, %p31
      %p33 = scmp.ne.s32.totalorder %s25, %s28
      %p34 = scmp.eq.s32.totalorder %s15, 0
      %p35 = por %p33, %p34
      %p36 = scmp.ne.s32.totalorder %s25, %s28
      %p37 = scmp.eq.s32.totalorder %s20, 1
      %p38 = por %p36, %p37
      %p39 = scmp.ne.s32.totalorder %s28, %s29
      %p40 = scmp.eq.s32.totalorder %s20, 0
      %p41 = por %p39, %p40
      %p42 = scmp.ne.s32.totalorder %s28, %s29
      %p43 = scmp.eq.s32.totalorder %s21, 1
      %p44 = por %p42, %p43
      %p46 = scmp.ne.s32.totalorder %s29, %s45
      %p47 = scmp.eq.s32.totalorder %s21, 0
      %p48 = por %p46, %p47
      %s50 = sadd.s32 %s49, 1
      %p53 = scmp.eq.s32.totalorder %s15, 1
      %p54 = scmp.ne.s32.totalorder %s49, %s51
      %p55 = scmp.eq.s32.totalorder %s15, 0
      %p56 = por %p54, %p55
      %p57 = scmp.ne.s32.totalorder %s49, %s51
      %p58 = scmp.eq.s32.totalorder %s20, 1
      %p59 = por %p57, %p58
      %p60 = scmp.ne.s32.totalorder %s51, %s52
      %p61 = scmp.eq.s32.totalorder %s20, 0
      %p62 = por %p60, %p61
      %p63 = scmp.ne.s32.totalorder %s51, %s52
      %p64 = scmp.eq.s32.totalorder %s21, 1
      %p65 = por %p63, %p64
      %p67 = scmp.ne.s32.totalorder %s52, %s66
      %p68 = scmp.eq.s32.totalorder %s21, 0
      %p69 = por %p67, %p68
      %s70 = ssub.s32 %s15, %s22
      %p71 = scmp.eq.s32.totalorder %s70, 0
      %s73 = sadd.s32 %s72, 1
      %s74 = scalar_select %p71, %s72, %s73
      %p77 = pneg %p71
      %p78 = scmp.eq.s32.totalorder %s15, 1
      %p79 = por %p77, %p78
      %p80 = scmp.ne.s32.totalorder %s72, %s75
      %p81 = scmp.eq.s32.totalorder %s15, 0
      %p82 = por %p80, %p81
      %p83 = scmp.ne.s32.totalorder %s72, %s75
      %p84 = scmp.eq.s32.totalorder %s20, 1
      %p85 = por %p83, %p84
      %p86 = scmp.ne.s32.totalorder %s75, %s76
      %p87 = scmp.eq.s32.totalorder %s20, 0
      %p88 = por %p86, %p87
      %p89 = scmp.ne.s32.totalorder %s75, %s76
      %p90 = scmp.eq.s32.totalorder %s21, 1
      %p91 = por %p89, %p90
      %p93 = scmp.ne.s32.totalorder %s76, %s92
      %p94 = scmp.eq.s32.totalorder %s21, 0
      %p95 = por %p93, %p94
      %p96 = scmp.le.s32.totalorder 1, %s15
      %p97 = scmp.lt.s32.totalorder %s15, 3
      %p98 = pnand %p96, %p97
      %p99 = pneg %p98
      // Predicated region
      $region9: #{tpu_custom_call.1} parent=5 // pred_check
        _
      $region10: #{tpu_custom_call.1} parent=5 // pred_check_branch
        %101 = sbr.rel (%p98) target = $region12
      $region11: #{tpu_custom_call.1} parent=5 // pred_region
        %s102 = ssub.s32 %s15, 1
        // Predicated region
        $region13: #{tpu_custom_call.1} parent=11 // pred_check
          %p103 = pneg %p62
        $region14: #{tpu_custom_call.1} parent=11 // pred_check_branch
          %105 = sbr.rel (%p103) target = $region16
        $region15: #{tpu_custom_call.1} parent=11 // pred_region
          %s107 = ssub.s32 512, 512
          %108 = vsyncadd [#allocation6], %s107
          %s109 = sshll.u32 [#allocation5], 4
          %s110 = int_to_ptr.vmem [resolvable:$true] %s109
          %115 = dma.hbm_to_vmem [thread:$0]  %s1, 512, %s110, [#allocation6], 128, 128, 8
        $region16: #{tpu_custom_call.1} parent=11 // pred_fallthru
          _
      $region12: #{tpu_custom_call.1} parent=5 // pred_fallthru
        _
      %p116 = scmp.lt.s32.totalorder %s15, 2
      // Predicated region
      $region17: #{tpu_custom_call.1} parent=5 // pred_check
        %p117 = pneg %p116
      $region18: #{tpu_custom_call.1} parent=5 // pred_check_branch
        %119 = sbr.rel (%p117) target = $region20
      $region19: #{tpu_custom_call.1} parent=5 // pred_region
        // Predicated region
        $region21: #{tpu_custom_call.1} parent=19 // pred_check
          %p120 = pneg %p35
        $region22: #{tpu_custom_call.1} parent=19 // pred_check_branch
          %122 = sbr.rel (%p120) target = $region24
        $region23: #{tpu_custom_call.1} parent=19 // pred_region
          %s123 = sand.u32 %s25, 1
          %s124 = scalar_lea.sflag [#allocation3], %s123
          %s125 = sand.u32 %s25, 1
          %s126 = smul.addr %s125, 8
          %s127 = scalar_lea.vmem [#allocation2], %s126
          %s129 = ssub.s32 128, 128
          %130 = vsyncadd %s124, %s129
          %s131 = smul.addr %s15, 128
          %s132 = scalar_lea.hbm %s0, %s131
          %s134 = sshll.u32 %s127, 4
          %s135 = int_to_ptr.vmem [resolvable:$true] %s134
          %137 = dma.hbm_to_vmem [thread:$0]  %s132, 128, %s135, %s124
        $region24: #{tpu_custom_call.1} parent=19 // pred_fallthru
          _
      $region20: #{tpu_custom_call.1} parent=5 // pred_fallthru
        _
      %p138 = scmp.le.s32.totalorder 1, %s15
      %p139 = scmp.lt.s32.totalorder %s15, 3
      %p140 = pnand %p138, %p139
      %p141 = pneg %p140
      // Predicated region
      $region25: #{tpu_custom_call.1} parent=5 // pred_check
        _
      $region26: #{tpu_custom_call.1} parent=5 // pred_check_branch
        %143 = sbr.rel (%p140) target = $region28
      $region27: #{tpu_custom_call.1} parent=5 // pred_region
        %s144 = ssub.s32 %s15, 1
        %s145 = sand.u32 %s28, 1
        %s146 = scalar_lea.sflag [#allocation3], %s145
        %s147 = sand.u32 %s28, 1
        %s148 = smul.addr %s147, 8
        %s149 = scalar_lea.vmem [#allocation2], %s148
        // Predicated region
        $region29: #{tpu_custom_call.1} parent=27 // pred_check
          %p150 = pneg %p41
        $region30: #{tpu_custom_call.1} parent=27 // pred_check_branch
          %152 = sbr.rel (%p150) target = $region32
        $region31: #{tpu_custom_call.1} parent=27 // pred_region
          %153 = dma.done %s146, 128
        $region32: #{tpu_custom_call.1} parent=27 // pred_fallthru
          _
        // Predicated region
        $region33: #{tpu_custom_call.1} parent=27 // pred_check
          %p154 = pneg %p62
        $region34: #{tpu_custom_call.1} parent=27 // pred_check_branch
          %156 = sbr.rel (%p154) target = $region36
        $region35: #{tpu_custom_call.1} parent=27 // pred_region
          %157 = dma.done [#allocation6], 512
        $region36: #{tpu_custom_call.1} parent=27 // pred_fallthru
          _
        %s158 = sand.u32 %s28, 1
        %s159 = scalar_lea.sflag [#allocation3], %s158
        %s160 = sand.u32 %s28, 1
        %s161 = smul.addr %s160, 8
        %s162 = scalar_lea.vmem [#allocation2], %s161
        %p163 = pneg %p41
        %p164 = pneg %p38
        %p165 = pneg %p62
        %p166 = pneg %p59
        %p167 = pneg %p88
        %p168 = pneg %p85
        %s169 = sand.u32 %s75, 1
        %s170 = scalar_lea.sflag [#allocation4], %s169
        %s171 = sand.u32 %s75, 1
        %s172 = smul.addr %s171, 8
        %s173 = scalar_lea.vmem [#allocation7], %s172
        %v174 = vld [vmem:[%s149] sm:$0xff]
        %v175 = vld [vmem:[#allocation5] sm:$0xff]
        %v176 = vld [vmem:[#allocation5 + $0x8] sm:$0xff]
        %v177 = vld [vmem:[#allocation5 + $0x10] sm:$0xff]
        %v178 = vld [vmem:[#allocation5 + $0x18] sm:$0xff]
        %vm179 = vcmask 261120
        %v181 = vsel %vm179, %v174, 0
        %183 = vmatprep.subr.mxu0 0.0
        %184 = vmatpush1.msra.mxu0 %v175
        %185 = vmatprep.subr.mxu0 0.0
        %186 = vmatpush1.msra.mxu0 %v176
        %187 = vmatprep.subr.mxu0 0.0
        %188 = vmatpush1.msra.mxu0 %v177
        %189 = vmatprep.subr.mxu0 0.0
        %190 = vmatpush1.msra.mxu0 %v178
        %191 = vmatprep.subr.mxu0 0.0
        %192 = vmatpush1.msra.mxu0 0.0
        %193 = vmatprep.subr.mxu0 0.0
        %194 = vmatpush1.msra.mxu0 0.0
        %195 = vmatprep.subr.mxu0 0.0
        %196 = vmatpush1.msra.mxu0 0.0
        %197 = vmatprep.subr.mxu0 0.0
        %198 = vmatpush1.msra.mxu0 0.0
        %199 = vmatprep.subr.mxu0 0.0
        %200 = vmatpush1.msra.mxu0 0.0
        %201 = vmatprep.subr.mxu0 0.0
        %202 = vmatpush1.msra.mxu0 0.0
        %203 = vmatprep.subr.mxu0 0.0
        %204 = vmatpush1.msra.mxu0 0.0
        %205 = vmatprep.subr.mxu0 0.0
        %206 = vmatpush1.msra.mxu0 0.0
        %207 = vmatprep.subr.mxu0 0.0
        %208 = vmatpush1.msra.mxu0 0.0
        %209 = vmatprep.subr.mxu0 0.0
        %210 = vmatpush1.msra.mxu0 0.0
        %211 = vmatprep.subr.mxu0 0.0
        %212 = vmatpush1.msra.mxu0 0.0
        %213 = vmatprep.subr.mxu0 0.0
        %214 = vmatpush1.msra.mxu0 0.0
        %215 = vmatprep.subr.mxu0 0.0
        %216 = vmatpush1.msra.mxu0 0.0
        %217 = vmatprep.subr.mxu0 0.0
        %218 = vmatpush1.msra.mxu0 0.0
        %219 = vmatprep.subr.mxu0 0.0
        %220 = vmatpush1.msra.mxu0 0.0
        %221 = vmatprep.subr.mxu0 0.0
        %222 = vmatpush1.msra.mxu0 0.0
        %223 = vmatprep.subr.mxu0 0.0
        %224 = vmatpush1.msra.mxu0 0.0
        %225 = vmatprep.subr.mxu0 0.0
        %226 = vmatpush1.msra.mxu0 0.0
        %227 = vmatprep.subr.mxu0 0.0
        %228 = vmatpush1.msra.mxu0 0.0
        %229 = vmatprep.subr.mxu0 0.0
        %230 = vmatpush1.msra.mxu0 0.0
        %231 = vmatprep.subr.mxu0 0.0
        %232 = vmatpush1.msra.mxu0 0.0
        %233 = vmatprep.subr.mxu0 0.0
        %234 = vmatpush1.msra.mxu0 0.0
        %235 = vmatprep.subr.mxu0 0.0
        %236 = vmatpush1.msra.mxu0 0.0
        %237 = vmatprep.subr.mxu0 0.0
        %238 = vmatpush1.msra.mxu0 0.0
        %239 = vmatprep.subr.mxu0 0.0
        %240 = vmatpush1.msra.mxu0 0.0
        %241 = vmatprep.subr.mxu0 0.0
        %242 = vmatpush1.msra.mxu0 0.0
        %243 = vmatprep.subr.mxu0 0.0
        %244 = vmatpush1.msra.mxu0 0.0
        %245 = vmatprep.subr.mxu0 0.0
        %246 = vmatpush1.msra.mxu0 0.0
        %247 = vmatprep.mubr.f32.mxu0 0.0
        %248 = vmatmul.mubr.f32.gmra.mrb[0].mxu0 %v181
        %v249 = vpop.f32.mrb[0].mxu0
        %v250 = vadd.f32 0.0, %v249
        %v251 = vpop.f32.mrb[0].mxu0
        %252 = vdwg.mxu0
        %v253 = vlaneseq
        %v254 = vshrl.u32 %v253, 7
        %v255 = vlaneseq
        %v256 = vand.u32 %v255, 127
        %vm257 = vcmp.le.s32.totalorder %v256, %v254
        %259 = vrot.lane.b32.xlu0 %v250, 96
        %v260 = vpop.permute.xlu0 %259
        %vm261 = vcmask 64512
        %v262 = vsel %vm261, %v250, 0
        %v264 = vsel %vm261, %v260, 0
        %266 = vmatprep.subr.mxu0 0.0
        %267 = vmatpush1.xpose.msra.mxu0 %v264
        %268 = vmatprep.subr.mxu0 0.0
        %269 = vmatpush1.xpose.msra.mxu0 0.0
        %270 = vmatprep.subr.mxu0 0.0
        %271 = vmatpush1.xpose.msra.mxu0 0.0
        %272 = vmatprep.subr.mxu0 0.0
        %273 = vmatpush1.xpose.msra.mxu0 0.0
        %274 = vmatprep.subr.mxu0 0.0
        %275 = vmatpush1.xpose.msra.mxu0 0.0
        %276 = vmatprep.subr.mxu0 0.0
        %277 = vmatpush1.xpose.msra.mxu0 0.0
        %278 = vmatprep.subr.mxu0 0.0
        %279 = vmatpush1.xpose.msra.mxu0 0.0
        %280 = vmatprep.subr.mxu0 0.0
        %281 = vmatpush1.xpose.msra.mxu0 0.0
        %282 = vmatprep.subr.mxu0 0.0
        %283 = vmatpush1.xpose.msra.mxu0 0.0
        %284 = vmatprep.subr.mxu0 0.0
        %285 = vmatpush1.xpose.msra.mxu0 0.0
        %286 = vmatprep.subr.mxu0 0.0
        %287 = vmatpush1.xpose.msra.mxu0 0.0
        %288 = vmatprep.subr.mxu0 0.0
        %289 = vmatpush1.xpose.msra.mxu0 0.0
        %290 = vmatprep.subr.mxu0 0.0
        %291 = vmatpush1.xpose.msra.mxu0 0.0
        %292 = vmatprep.subr.mxu0 0.0
        %293 = vmatpush1.xpose.msra.mxu0 0.0
        %294 = vmatprep.subr.mxu0 0.0
        %295 = vmatpush1.xpose.msra.mxu0 0.0
        %296 = vmatprep.subr.mxu0 0.0
        %297 = vmatpush1.xpose.msra.mxu0 0.0
        %298 = vmatprep.subr.mxu0 0.0
        %299 = vmatpush1.xpose.msra.mxu0 0.0
        %300 = vmatprep.subr.mxu0 0.0
        %301 = vmatpush1.xpose.msra.mxu0 0.0
        %302 = vmatprep.subr.mxu0 0.0
        %303 = vmatpush1.xpose.msra.mxu0 0.0
        %304 = vmatprep.subr.mxu0 0.0
        %305 = vmatpush1.xpose.msra.mxu0 0.0
        %306 = vmatprep.subr.mxu0 0.0
        %307 = vmatpush1.xpose.msra.mxu0 0.0
        %308 = vmatprep.subr.mxu0 0.0
        %309 = vmatpush1.xpose.msra.mxu0 0.0
        %310 = vmatprep.subr.mxu0 0.0
        %311 = vmatpush1.xpose.msra.mxu0 0.0
        %312 = vmatprep.subr.mxu0 0.0
        %313 = vmatpush1.xpose.msra.mxu0 0.0
        %314 = vmatprep.subr.mxu0 0.0
        %315 = vmatpush1.xpose.msra.mxu0 0.0
        %316 = vmatprep.subr.mxu0 0.0
        %317 = vmatpush1.xpose.msra.mxu0 0.0
        %318 = vmatprep.subr.mxu0 0.0
        %319 = vmatpush1.xpose.msra.mxu0 0.0
        %320 = vmatprep.subr.mxu0 0.0
        %321 = vmatpush1.xpose.msra.mxu0 0.0
        %322 = vmatprep.subr.mxu0 0.0
        %323 = vmatpush1.xpose.msra.mxu0 0.0
        %324 = vmatprep.subr.mxu0 0.0
        %325 = vmatpush1.xpose.msra.mxu0 0.0
        %326 = vmatprep.subr.mxu0 0.0
        %327 = vmatpush1.xpose.msra.mxu0 0.0
        %328 = vmatprep.subr.mxu0 0.0
        %329 = vmatpush1.xpose.msra.mxu0 0.0
        %330 = vmatprep.mubr.f32.mxu0 0.0
        %331 = vmatmul.mubr.f32.gmra.mrb[0].mxu0 %v262
        %v332 = vpop.f32.mrb[0].mxu0
        %v333 = vadd.f32 0.0, %v332
        %v334 = vpop.f32.mrb[0].mxu0
        %335 = vdwg.mxu0
        %v336 = vsel %vm257, %v333, -inf
        %v337 = vsel %vm261, %v336, -inf
        %338 = vmax.xlane.f32.xlu0 %v337
        %v339 = vpop.xlane.xlu0 %338
        %v340 = vsub.f32 %v336, %v339
        %v341 = vmul.f32 %v340, 1.442695
        %v342 = vpow.pop %v341
        %v343 = vsel %vm261, %v342, 0.0
        %344 = vadd.xlane.f32.xlu0 %v343
        %v345 = vpop.xlane.xlu0 %344
        %346 = vrot.lane.b32.xlu0 %v250, 64
        %v347 = vpop.permute.xlu0 %346
        %v350 = vsel %vm261, %v342, 0
        %352 = vmatprep.subr.mxu0 0.0
        %353 = vmatpush1.msra.mxu0 %v347
        %354 = vmatprep.subr.mxu0 0.0
        %355 = vmatpush1.msra.mxu0 0.0
        %356 = vmatprep.subr.mxu0 0.0
        %357 = vmatpush1.msra.mxu0 0.0
        %358 = vmatprep.subr.mxu0 0.0
        %359 = vmatpush1.msra.mxu0 0.0
        %360 = vmatprep.subr.mxu0 0.0
        %361 = vmatpush1.msra.mxu0 0.0
        %362 = vmatprep.subr.mxu0 0.0
        %363 = vmatpush1.msra.mxu0 0.0
        %364 = vmatprep.subr.mxu0 0.0
        %365 = vmatpush1.msra.mxu0 0.0
        %366 = vmatprep.subr.mxu0 0.0
        %367 = vmatpush1.msra.mxu0 0.0
        %368 = vmatprep.subr.mxu0 0.0
        %369 = vmatpush1.msra.mxu0 0.0
        %370 = vmatprep.subr.mxu0 0.0
        %371 = vmatpush1.msra.mxu0 0.0
        %372 = vmatprep.subr.mxu0 0.0
        %373 = vmatpush1.msra.mxu0 0.0
        %374 = vmatprep.subr.mxu0 0.0
        %375 = vmatpush1.msra.mxu0 0.0
        %376 = vmatprep.subr.mxu0 0.0
        %377 = vmatpush1.msra.mxu0 0.0
        %378 = vmatprep.subr.mxu0 0.0
        %379 = vmatpush1.msra.mxu0 0.0
        %380 = vmatprep.subr.mxu0 0.0
        %381 = vmatpush1.msra.mxu0 0.0
        %382 = vmatprep.subr.mxu0 0.0
        %383 = vmatpush1.msra.mxu0 0.0
        %384 = vmatprep.subr.mxu0 0.0
        %385 = vmatpush1.msra.mxu0 0.0
        %386 = vmatprep.subr.mxu0 0.0
        %387 = vmatpush1.msra.mxu0 0.0
        %388 = vmatprep.subr.mxu0 0.0
        %389 = vmatpush1.msra.mxu0 0.0
        %390 = vmatprep.subr.mxu0 0.0
        %391 = vmatpush1.msra.mxu0 0.0
        %392 = vmatprep.subr.mxu0 0.0
        %393 = vmatpush1.msra.mxu0 0.0
        %394 = vmatprep.subr.mxu0 0.0
        %395 = vmatpush1.msra.mxu0 0.0
        %396 = vmatprep.subr.mxu0 0.0
        %397 = vmatpush1.msra.mxu0 0.0
        %398 = vmatprep.subr.mxu0 0.0
        %399 = vmatpush1.msra.mxu0 0.0
        %400 = vmatprep.subr.mxu0 0.0
        %401 = vmatpush1.msra.mxu0 0.0
        %402 = vmatprep.subr.mxu0 0.0
        %403 = vmatpush1.msra.mxu0 0.0
        %404 = vmatprep.subr.mxu0 0.0
        %405 = vmatpush1.msra.mxu0 0.0
        %406 = vmatprep.subr.mxu0 0.0
        %407 = vmatpush1.msra.mxu0 0.0
        %408 = vmatprep.subr.mxu0 0.0
        %409 = vmatpush1.msra.mxu0 0.0
        %410 = vmatprep.subr.mxu0 0.0
        %411 = vmatpush1.msra.mxu0 0.0
        %412 = vmatprep.subr.mxu0 0.0
        %413 = vmatpush1.msra.mxu0 0.0
        %414 = vmatprep.subr.mxu0 0.0
        %415 = vmatpush1.msra.mxu0 0.0
        %416 = vmatprep.mubr.f32.mxu0 0.0
        %417 = vmatmul.mubr.f32.gmra.mrb[0].mxu0 %v350
        %v418 = vpop.f32.mrb[0].mxu0
        %v419 = vadd.f32 0.0, %v418
        %v420 = vpop.f32.mrb[0].mxu0
        %421 = vdwg.mxu0
        %v422 = vrcp.pop %v345
        %v423 = vmul.f32 %v419, %v422
        %424 = vrot.lane.b32.xlu0 %v250, 120
        %v425 = vpop.permute.xlu0 %424
        %426 = vrot.lane.b32.xlu0 %v250, 88
        %v427 = vpop.permute.xlu0 %426
        %v428 = vsel %vm261, %v425, 0
        %v430 = vsel %vm261, %v427, 0
        %432 = vmatprep.subr.mxu0 0.0
        %433 = vmatpush1.xpose.msra.mxu0 %v430
        %434 = vmatprep.subr.mxu0 0.0
        %435 = vmatpush1.xpose.msra.mxu0 0.0
        %436 = vmatprep.subr.mxu0 0.0
        %437 = vmatpush1.xpose.msra.mxu0 0.0
        %438 = vmatprep.subr.mxu0 0.0
        %439 = vmatpush1.xpose.msra.mxu0 0.0
        %440 = vmatprep.subr.mxu0 0.0
        %441 = vmatpush1.xpose.msra.mxu0 0.0
        %442 = vmatprep.subr.mxu0 0.0
        %443 = vmatpush1.xpose.msra.mxu0 0.0
        %444 = vmatprep.subr.mxu0 0.0
        %445 = vmatpush1.xpose.msra.mxu0 0.0
        %446 = vmatprep.subr.mxu0 0.0
        %447 = vmatpush1.xpose.msra.mxu0 0.0
        %448 = vmatprep.subr.mxu0 0.0
        %449 = vmatpush1.xpose.msra.mxu0 0.0
        %450 = vmatprep.subr.mxu0 0.0
        %451 = vmatpush1.xpose.msra.mxu0 0.0
        %452 = vmatprep.subr.mxu0 0.0
        %453 = vmatpush1.xpose.msra.mxu0 0.0
        %454 = vmatprep.subr.mxu0 0.0
        %455 = vmatpush1.xpose.msra.mxu0 0.0
        %456 = vmatprep.subr.mxu0 0.0
        %457 = vmatpush1.xpose.msra.mxu0 0.0
        %458 = vmatprep.subr.mxu0 0.0
        %459 = vmatpush1.xpose.msra.mxu0 0.0
        %460 = vmatprep.subr.mxu0 0.0
        %461 = vmatpush1.xpose.msra.mxu0 0.0
        %462 = vmatprep.subr.mxu0 0.0
        %463 = vmatpush1.xpose.msra.mxu0 0.0
        %464 = vmatprep.subr.mxu0 0.0
        %465 = vmatpush1.xpose.msra.mxu0 0.0
        %466 = vmatprep.subr.mxu0 0.0
        %467 = vmatpush1.xpose.msra.mxu0 0.0
        %468 = vmatprep.subr.mxu0 0.0
        %469 = vmatpush1.xpose.msra.mxu0 0.0
        %470 = vmatprep.subr.mxu0 0.0
        %471 = vmatpush1.xpose.msra.mxu0 0.0
        %472 = vmatprep.subr.mxu0 0.0
        %473 = vmatpush1.xpose.msra.mxu0 0.0
        %474 = vmatprep.subr.mxu0 0.0
        %475 = vmatpush1.xpose.msra.mxu0 0.0
        %476 = vmatprep.subr.mxu0 0.0
        %477 = vmatpush1.xpose.msra.mxu0 0.0
        %478 = vmatprep.subr.mxu0 0.0
        %479 = vmatpush1.xpose.msra.mxu0 0.0
        %480 = vmatprep.subr.mxu0 0.0
        %481 = vmatpush1.xpose.msra.mxu0 0.0
        %482 = vmatprep.subr.mxu0 0.0
        %483 = vmatpush1.xpose.msra.mxu0 0.0
        %484 = vmatprep.subr.mxu0 0.0
        %485 = vmatpush1.xpose.msra.mxu0 0.0
        %486 = vmatprep.subr.mxu0 0.0
        %487 = vmatpush1.xpose.msra.mxu0 0.0
        %488 = vmatprep.subr.mxu0 0.0
        %489 = vmatpush1.xpose.msra.mxu0 0.0
        %490 = vmatprep.subr.mxu0 0.0
        %491 = vmatpush1.xpose.msra.mxu0 0.0
        %492 = vmatprep.subr.mxu0 0.0
        %493 = vmatpush1.xpose.msra.mxu0 0.0
        %494 = vmatprep.subr.mxu0 0.0
        %495 = vmatpush1.xpose.msra.mxu0 0.0
        %496 = vmatprep.mubr.f32.mxu0 0.0
        %497 = vmatmul.mubr.f32.gmra.mrb[0].mxu0 %v428
        %v498 = vpop.f32.mrb[0].mxu0
        %v499 = vadd.f32 0.0, %v498
        %v500 = vpop.f32.mrb[0].mxu0
        %501 = vdwg.mxu0
        %v502 = vsel %vm257, %v499, -inf
        %v503 = vsel %vm261, %v502, -inf
        %504 = vmax.xlane.f32.xlu0 %v503
        %v505 = vpop.xlane.xlu0 %504
        %v506 = vsub.f32 %v502, %v505
        %v507 = vmul.f32 %v506, 1.442695
        %v508 = vpow.pop %v507
        %v509 = vsel %vm261, %v508, 0.0
        %510 = vadd.xlane.f32.xlu0 %v509
        %v511 = vpop.xlane.xlu0 %510
        %512 = vrot.lane.b32.xlu0 %v250, 56
        %v513 = vpop.permute.xlu0 %512
        %v516 = vsel %vm261, %v508, 0
        %518 = vmatprep.subr.mxu0 0.0
        %519 = vmatpush1.msra.mxu0 %v513
        %520 = vmatprep.subr.mxu0 0.0
        %521 = vmatpush1.msra.mxu0 0.0
        %522 = vmatprep.subr.mxu0 0.0
        %523 = vmatpush1.msra.mxu0 0.0
        %524 = vmatprep.subr.mxu0 0.0
        %525 = vmatpush1.msra.mxu0 0.0
        %526 = vmatprep.subr.mxu0 0.0
        %527 = vmatpush1.msra.mxu0 0.0
        %528 = vmatprep.subr.mxu0 0.0
        %529 = vmatpush1.msra.mxu0 0.0
        %530 = vmatprep.subr.mxu0 0.0
        %531 = vmatpush1.msra.mxu0 0.0
        %532 = vmatprep.subr.mxu0 0.0
        %533 = vmatpush1.msra.mxu0 0.0
        %534 = vmatprep.subr.mxu0 0.0
        %535 = vmatpush1.msra.mxu0 0.0
        %536 = vmatprep.subr.mxu0 0.0
        %537 = vmatpush1.msra.mxu0 0.0
        %538 = vmatprep.subr.mxu0 0.0
        %539 = vmatpush1.msra.mxu0 0.0
        %540 = vmatprep.subr.mxu0 0.0
        %541 = vmatpush1.msra.mxu0 0.0
        %542 = vmatprep.subr.mxu0 0.0
        %543 = vmatpush1.msra.mxu0 0.0
        %544 = vmatprep.subr.mxu0 0.0
        %545 = vmatpush1.msra.mxu0 0.0
        %546 = vmatprep.subr.mxu0 0.0
        %547 = vmatpush1.msra.mxu0 0.0
        %548 = vmatprep.subr.mxu0 0.0
        %549 = vmatpush1.msra.mxu0 0.0
        %550 = vmatprep.subr.mxu0 0.0
        %551 = vmatpush1.msra.mxu0 0.0
        %552 = vmatprep.subr.mxu0 0.0
        %553 = vmatpush1.msra.mxu0 0.0
        %554 = vmatprep.subr.mxu0 0.0
        %555 = vmatpush1.msra.mxu0 0.0
        %556 = vmatprep.subr.mxu0 0.0
        %557 = vmatpush1.msra.mxu0 0.0
        %558 = vmatprep.subr.mxu0 0.0
        %559 = vmatpush1.msra.mxu0 0.0
        %560 = vmatprep.subr.mxu0 0.0
        %561 = vmatpush1.msra.mxu0 0.0
        %562 = vmatprep.subr.mxu0 0.0
        %563 = vmatpush1.msra.mxu0 0.0
        %564 = vmatprep.subr.mxu0 0.0
        %565 = vmatpush1.msra.mxu0 0.0
        %566 = vmatprep.subr.mxu0 0.0
        %567 = vmatpush1.msra.mxu0 0.0
        %568 = vmatprep.subr.mxu0 0.0
        %569 = vmatpush1.msra.mxu0 0.0
        %570 = vmatprep.subr.mxu0 0.0
        %571 = vmatpush1.msra.mxu0 0.0
        %572 = vmatprep.subr.mxu0 0.0
        %573 = vmatpush1.msra.mxu0 0.0
        %574 = vmatprep.subr.mxu0 0.0
        %575 = vmatpush1.msra.mxu0 0.0
        %576 = vmatprep.subr.mxu0 0.0
        %577 = vmatpush1.msra.mxu0 0.0
        %578 = vmatprep.subr.mxu0 0.0
        %579 = vmatpush1.msra.mxu0 0.0
        %580 = vmatprep.subr.mxu0 0.0
        %581 = vmatpush1.msra.mxu0 0.0
        %582 = vmatprep.mubr.f32.mxu0 0.0
        %583 = vmatmul.mubr.f32.gmra.mrb[0].mxu0 %v516
        %v584 = vpop.f32.mrb[0].mxu0
        %v585 = vadd.f32 0.0, %v584
        %v586 = vpop.f32.mrb[0].mxu0
        %587 = vdwg.mxu0
        %v588 = vrcp.pop %v511
        %v589 = vmul.f32 %v585, %v588
        %590 = vrot.lane.b32.xlu0 %v250, 112
        %v591 = vpop.permute.xlu0 %590
        %592 = vrot.lane.b32.xlu0 %v250, 80
        %v593 = vpop.permute.xlu0 %592
        %v594 = vsel %vm261, %v591, 0
        %v596 = vsel %vm261, %v593, 0
        %598 = vmatprep.subr.mxu0 0.0
        %599 = vmatpush1.xpose.msra.mxu0 %v596
        %600 = vmatprep.subr.mxu0 0.0
        %601 = vmatpush1.xpose.msra.mxu0 0.0
        %602 = vmatprep.subr.mxu0 0.0
        %603 = vmatpush1.xpose.msra.mxu0 0.0
        %604 = vmatprep.subr.mxu0 0.0
        %605 = vmatpush1.xpose.msra.mxu0 0.0
        %606 = vmatprep.subr.mxu0 0.0
        %607 = vmatpush1.xpose.msra.mxu0 0.0
        %608 = vmatprep.subr.mxu0 0.0
        %609 = vmatpush1.xpose.msra.mxu0 0.0
        %610 = vmatprep.subr.mxu0 0.0
        %611 = vmatpush1.xpose.msra.mxu0 0.0
        %612 = vmatprep.subr.mxu0 0.0
        %613 = vmatpush1.xpose.msra.mxu0 0.0
        %614 = vmatprep.subr.mxu0 0.0
        %615 = vmatpush1.xpose.msra.mxu0 0.0
        %616 = vmatprep.subr.mxu0 0.0
        %617 = vmatpush1.xpose.msra.mxu0 0.0
        %618 = vmatprep.subr.mxu0 0.0
        %619 = vmatpush1.xpose.msra.mxu0 0.0
        %620 = vmatprep.subr.mxu0 0.0
        %621 = vmatpush1.xpose.msra.mxu0 0.0
        %622 = vmatprep.subr.mxu0 0.0
        %623 = vmatpush1.xpose.msra.mxu0 0.0
        %624 = vmatprep.subr.mxu0 0.0
        %625 = vmatpush1.xpose.msra.mxu0 0.0
        %626 = vmatprep.subr.mxu0 0.0
        %627 = vmatpush1.xpose.msra.mxu0 0.0
        %628 = vmatprep.subr.mxu0 0.0
        %629 = vmatpush1.xpose.msra.mxu0 0.0
        %630 = vmatprep.subr.mxu0 0.0
        %631 = vmatpush1.xpose.msra.mxu0 0.0
        %632 = vmatprep.subr.mxu0 0.0
        %633 = vmatpush1.xpose.msra.mxu0 0.0
        %634 = vmatprep.subr.mxu0 0.0
        %635 = vmatpush1.xpose.msra.mxu0 0.0
        %636 = vmatprep.subr.mxu0 0.0
        %637 = vmatpush1.xpose.msra.mxu0 0.0
        %638 = vmatprep.subr.mxu0 0.0
        %639 = vmatpush1.xpose.msra.mxu0 0.0
        %640 = vmatprep.subr.mxu0 0.0
        %641 = vmatpush1.xpose.msra.mxu0 0.0
        %642 = vmatprep.subr.mxu0 0.0
        %643 = vmatpush1.xpose.msra.mxu0 0.0
        %644 = vmatprep.subr.mxu0 0.0
        %645 = vmatpush1.xpose.msra.mxu0 0.0
        %646 = vmatprep.subr.mxu0 0.0
        %647 = vmatpush1.xpose.msra.mxu0 0.0
        %648 = vmatprep.subr.mxu0 0.0
        %649 = vmatpush1.xpose.msra.mxu0 0.0
        %650 = vmatprep.subr.mxu0 0.0
        %651 = vmatpush1.xpose.msra.mxu0 0.0
        %652 = vmatprep.subr.mxu0 0.0
        %653 = vmatpush1.xpose.msra.mxu0 0.0
        %654 = vmatprep.subr.mxu0 0.0
        %655 = vmatpush1.xpose.msra.mxu0 0.0
        %656 = vmatprep.subr.mxu0 0.0
        %657 = vmatpush1.xpose.msra.mxu0 0.0
        %658 = vmatprep.subr.mxu0 0.0
        %659 = vmatpush1.xpose.msra.mxu0 0.0
        %660 = vmatprep.subr.mxu0 0.0
        %661 = vmatpush1.xpose.msra.mxu0 0.0
        %662 = vmatprep.mubr.f32.mxu0 0.0
        %663 = vmatmul.mubr.f32.gmra.mrb[0].mxu0 %v594
        %v664 = vpop.f32.mrb[0].mxu0
        %v665 = vadd.f32 0.0, %v664
        %v666 = vpop.f32.mrb[0].mxu0
        %667 = vdwg.mxu0
        %v668 = vsel %vm257, %v665, -inf
        %v669 = vsel %vm261, %v668, -inf
        %670 = vmax.xlane.f32.xlu0 %v669
        %v671 = vpop.xlane.xlu0 %670
        %v672 = vsub.f32 %v668, %v671
        %v673 = vmul.f32 %v672, 1.442695
        %v674 = vpow.pop %v673
        %v675 = vsel %vm261, %v674, 0.0
        %676 = vadd.xlane.f32.xlu0 %v675
        %v677 = vpop.xlane.xlu0 %676
        %678 = vrot.lane.b32.xlu0 %v250, 48
        %v679 = vpop.permute.xlu0 %678
        %v682 = vsel %vm261, %v674, 0
        %684 = vmatprep.subr.mxu0 0.0
        %685 = vmatpush1.msra.mxu0 %v679
        %686 = vmatprep.subr.mxu0 0.0
        %687 = vmatpush1.msra.mxu0 0.0
        %688 = vmatprep.subr.mxu0 0.0
        %689 = vmatpush1.msra.mxu0 0.0
        %690 = vmatprep.subr.mxu0 0.0
        %691 = vmatpush1.msra.mxu0 0.0
        %692 = vmatprep.subr.mxu0 0.0
        %693 = vmatpush1.msra.mxu0 0.0
        %694 = vmatprep.subr.mxu0 0.0
        %695 = vmatpush1.msra.mxu0 0.0
        %696 = vmatprep.subr.mxu0 0.0
        %697 = vmatpush1.msra.mxu0 0.0
        %698 = vmatprep.subr.mxu0 0.0
        %699 = vmatpush1.msra.mxu0 0.0
        %700 = vmatprep.subr.mxu0 0.0
        %701 = vmatpush1.msra.mxu0 0.0
        %702 = vmatprep.subr.mxu0 0.0
        %703 = vmatpush1.msra.mxu0 0.0
        %704 = vmatprep.subr.mxu0 0.0
        %705 = vmatpush1.msra.mxu0 0.0
        %706 = vmatprep.subr.mxu0 0.0
        %707 = vmatpush1.msra.mxu0 0.0
        %708 = vmatprep.subr.mxu0 0.0
        %709 = vmatpush1.msra.mxu0 0.0
        %710 = vmatprep.subr.mxu0 0.0
        %711 = vmatpush1.msra.mxu0 0.0
        %712 = vmatprep.subr.mxu0 0.0
        %713 = vmatpush1.msra.mxu0 0.0
        %714 = vmatprep.subr.mxu0 0.0
        %715 = vmatpush1.msra.mxu0 0.0
        %716 = vmatprep.subr.mxu0 0.0
        %717 = vmatpush1.msra.mxu0 0.0
        %718 = vmatprep.subr.mxu0 0.0
        %719 = vmatpush1.msra.mxu0 0.0
        %720 = vmatprep.subr.mxu0 0.0
        %721 = vmatpush1.msra.mxu0 0.0
        %722 = vmatprep.subr.mxu0 0.0
        %723 = vmatpush1.msra.mxu0 0.0
        %724 = vmatprep.subr.mxu0 0.0
        %725 = vmatpush1.msra.mxu0 0.0
        %726 = vmatprep.subr.mxu0 0.0
        %727 = vmatpush1.msra.mxu0 0.0
        %728 = vmatprep.subr.mxu0 0.0
        %729 = vmatpush1.msra.mxu0 0.0
        %730 = vmatprep.subr.mxu0 0.0
        %731 = vmatpush1.msra.mxu0 0.0
        %732 = vmatprep.subr.mxu0 0.0
        %733 = vmatpush1.msra.mxu0 0.0
        %734 = vmatprep.subr.mxu0 0.0
        %735 = vmatpush1.msra.mxu0 0.0
        %736 = vmatprep.subr.mxu0 0.0
        %737 = vmatpush1.msra.mxu0 0.0
        %738 = vmatprep.subr.mxu0 0.0
        %739 = vmatpush1.msra.mxu0 0.0
        %740 = vmatprep.subr.mxu0 0.0
        %741 = vmatpush1.msra.mxu0 0.0
        %742 = vmatprep.subr.mxu0 0.0
        %743 = vmatpush1.msra.mxu0 0.0
        %744 = vmatprep.subr.mxu0 0.0
        %745 = vmatpush1.msra.mxu0 0.0
        %746 = vmatprep.subr.mxu0 0.0
        %747 = vmatpush1.msra.mxu0 0.0
        %748 = vmatprep.mubr.f32.mxu0 0.0
        %749 = vmatmul.mubr.f32.gmra.mrb[0].mxu0 %v682
        %v750 = vpop.f32.mrb[0].mxu0
        %v751 = vadd.f32 0.0, %v750
        %v752 = vpop.f32.mrb[0].mxu0
        %753 = vdwg.mxu0
        %v754 = vrcp.pop %v677
        %v755 = vmul.f32 %v751, %v754
        %756 = vrot.lane.b32.xlu0 %v250, 104
        %v757 = vpop.permute.xlu0 %756
        %758 = vrot.lane.b32.xlu0 %v250, 72
        %v759 = vpop.permute.xlu0 %758
        %v760 = vsel %vm261, %v757, 0
        %v762 = vsel %vm261, %v759, 0
        %764 = vmatprep.subr.mxu0 0.0
        %765 = vmatpush1.xpose.msra.mxu0 %v762
        %766 = vmatprep.subr.mxu0 0.0
        %767 = vmatpush1.xpose.msra.mxu0 0.0
        %768 = vmatprep.subr.mxu0 0.0
        %769 = vmatpush1.xpose.msra.mxu0 0.0
        %770 = vmatprep.subr.mxu0 0.0
        %771 = vmatpush1.xpose.msra.mxu0 0.0
        %772 = vmatprep.subr.mxu0 0.0
        %773 = vmatpush1.xpose.msra.mxu0 0.0
        %774 = vmatprep.subr.mxu0 0.0
        %775 = vmatpush1.xpose.msra.mxu0 0.0
        %776 = vmatprep.subr.mxu0 0.0
        %777 = vmatpush1.xpose.msra.mxu0 0.0
        %778 = vmatprep.subr.mxu0 0.0
        %779 = vmatpush1.xpose.msra.mxu0 0.0
        %780 = vmatprep.subr.mxu0 0.0
        %781 = vmatpush1.xpose.msra.mxu0 0.0
        %782 = vmatprep.subr.mxu0 0.0
        %783 = vmatpush1.xpose.msra.mxu0 0.0
        %784 = vmatprep.subr.mxu0 0.0
        %785 = vmatpush1.xpose.msra.mxu0 0.0
        %786 = vmatprep.subr.mxu0 0.0
        %787 = vmatpush1.xpose.msra.mxu0 0.0
        %788 = vmatprep.subr.mxu0 0.0
        %789 = vmatpush1.xpose.msra.mxu0 0.0
        %790 = vmatprep.subr.mxu0 0.0
        %791 = vmatpush1.xpose.msra.mxu0 0.0
        %792 = vmatprep.subr.mxu0 0.0
        %793 = vmatpush1.xpose.msra.mxu0 0.0
        %794 = vmatprep.subr.mxu0 0.0
        %795 = vmatpush1.xpose.msra.mxu0 0.0
        %796 = vmatprep.subr.mxu0 0.0
        %797 = vmatpush1.xpose.msra.mxu0 0.0
        %798 = vmatprep.subr.mxu0 0.0
        %799 = vmatpush1.xpose.msra.mxu0 0.0
        %800 = vmatprep.subr.mxu0 0.0
        %801 = vmatpush1.xpose.msra.mxu0 0.0
        %802 = vmatprep.subr.mxu0 0.0
        %803 = vmatpush1.xpose.msra.mxu0 0.0
        %804 = vmatprep.subr.mxu0 0.0
        %805 = vmatpush1.xpose.msra.mxu0 0.0
        %806 = vmatprep.subr.mxu0 0.0
        %807 = vmatpush1.xpose.msra.mxu0 0.0
        %808 = vmatprep.subr.mxu0 0.0
        %809 = vmatpush1.xpose.msra.mxu0 0.0
        %810 = vmatprep.subr.mxu0 0.0
        %811 = vmatpush1.xpose.msra.mxu0 0.0
        %812 = vmatprep.subr.mxu0 0.0
        %813 = vmatpush1.xpose.msra.mxu0 0.0
        %814 = vmatprep.subr.mxu0 0.0
        %815 = vmatpush1.xpose.msra.mxu0 0.0
        %816 = vmatprep.subr.mxu0 0.0
        %817 = vmatpush1.xpose.msra.mxu0 0.0
        %818 = vmatprep.subr.mxu0 0.0
        %819 = vmatpush1.xpose.msra.mxu0 0.0
        %820 = vmatprep.subr.mxu0 0.0
        %821 = vmatpush1.xpose.msra.mxu0 0.0
        %822 = vmatprep.subr.mxu0 0.0
        %823 = vmatpush1.xpose.msra.mxu0 0.0
        %824 = vmatprep.subr.mxu0 0.0
        %825 = vmatpush1.xpose.msra.mxu0 0.0
        %826 = vmatprep.subr.mxu0 0.0
        %827 = vmatpush1.xpose.msra.mxu0 0.0
        %828 = vmatprep.mubr.f32.mxu0 0.0
        %829 = vmatmul.mubr.f32.gmra.mrb[0].mxu0 %v760
        %v830 = vpop.f32.mrb[0].mxu0
        %v831 = vadd.f32 0.0, %v830
        %v832 = vpop.f32.mrb[0].mxu0
        %833 = vdwg.mxu0
        %v834 = vsel %vm257, %v831, -inf
        %v835 = vsel %vm261, %v834, -inf
        %836 = vmax.xlane.f32.xlu0 %v835
        %v837 = vpop.xlane.xlu0 %836
        %v838 = vsub.f32 %v834, %v837
        %v839 = vmul.f32 %v838, 1.442695
        %v840 = vpow.pop %v839
        %v841 = vsel %vm261, %v840, 0.0
        %842 = vadd.xlane.f32.xlu0 %v841
        %v843 = vpop.xlane.xlu0 %842
        %844 = vrot.lane.b32.xlu0 %v250, 40
        %v845 = vpop.permute.xlu0 %844
        %v848 = vsel %vm261, %v840, 0
        %850 = vmatprep.subr.mxu0 0.0
        %851 = vmatpush1.msra.mxu0 %v845
        %852 = vmatprep.subr.mxu0 0.0
        %853 = vmatpush1.msra.mxu0 0.0
        %854 = vmatprep.subr.mxu0 0.0
        %855 = vmatpush1.msra.mxu0 0.0
        %856 = vmatprep.subr.mxu0 0.0
        %857 = vmatpush1.msra.mxu0 0.0
        %858 = vmatprep.subr.mxu0 0.0
        %859 = vmatpush1.msra.mxu0 0.0
        %860 = vmatprep.subr.mxu0 0.0
        %861 = vmatpush1.msra.mxu0 0.0
        %862 = vmatprep.subr.mxu0 0.0
        %863 = vmatpush1.msra.mxu0 0.0
        %864 = vmatprep.subr.mxu0 0.0
        %865 = vmatpush1.msra.mxu0 0.0
        %866 = vmatprep.subr.mxu0 0.0
        %867 = vmatpush1.msra.mxu0 0.0
        %868 = vmatprep.subr.mxu0 0.0
        %869 = vmatpush1.msra.mxu0 0.0
        %870 = vmatprep.subr.mxu0 0.0
        %871 = vmatpush1.msra.mxu0 0.0
        %872 = vmatprep.subr.mxu0 0.0
        %873 = vmatpush1.msra.mxu0 0.0
        %874 = vmatprep.subr.mxu0 0.0
        %875 = vmatpush1.msra.mxu0 0.0
        %876 = vmatprep.subr.mxu0 0.0
        %877 = vmatpush1.msra.mxu0 0.0
        %878 = vmatprep.subr.mxu0 0.0
        %879 = vmatpush1.msra.mxu0 0.0
        %880 = vmatprep.subr.mxu0 0.0
        %881 = vmatpush1.msra.mxu0 0.0
        %882 = vmatprep.subr.mxu0 0.0
        %883 = vmatpush1.msra.mxu0 0.0
        %884 = vmatprep.subr.mxu0 0.0
        %885 = vmatpush1.msra.mxu0 0.0
        %886 = vmatprep.subr.mxu0 0.0
        %887 = vmatpush1.msra.mxu0 0.0
        %888 = vmatprep.subr.mxu0 0.0
        %889 = vmatpush1.msra.mxu0 0.0
        %890 = vmatprep.subr.mxu0 0.0
        %891 = vmatpush1.msra.mxu0 0.0
        %892 = vmatprep.subr.mxu0 0.0
        %893 = vmatpush1.msra.mxu0 0.0
        %894 = vmatprep.subr.mxu0 0.0
        %895 = vmatpush1.msra.mxu0 0.0
        %896 = vmatprep.subr.mxu0 0.0
        %897 = vmatpush1.msra.mxu0 0.0
        %898 = vmatprep.subr.mxu0 0.0
        %899 = vmatpush1.msra.mxu0 0.0
        %900 = vmatprep.subr.mxu0 0.0
        %901 = vmatpush1.msra.mxu0 0.0
        %902 = vmatprep.subr.mxu0 0.0
        %903 = vmatpush1.msra.mxu0 0.0
        %904 = vmatprep.subr.mxu0 0.0
        %905 = vmatpush1.msra.mxu0 0.0
        %906 = vmatprep.subr.mxu0 0.0
        %907 = vmatpush1.msra.mxu0 0.0
        %908 = vmatprep.subr.mxu0 0.0
        %909 = vmatpush1.msra.mxu0 0.0
        %910 = vmatprep.subr.mxu0 0.0
        %911 = vmatpush1.msra.mxu0 0.0
        %912 = vmatprep.subr.mxu0 0.0
        %913 = vmatpush1.msra.mxu0 0.0
        %914 = vmatprep.mubr.f32.mxu0 0.0
        %915 = vmatmul.mubr.f32.gmra.mrb[0].mxu0 %v848
        %v916 = vpop.f32.mrb[0].mxu0
        %v917 = vadd.f32 0.0, %v916
        %v918 = vpop.f32.mrb[0].mxu0
        %919 = vdwg.mxu0
        %v920 = vrcp.pop %v843
        %v921 = vmul.f32 %v917, %v920
        %923 = vrot.lane.b32.xlu0 %v589, 8
        %v924 = vpop.permute.xlu0 %923
        %927 = vrot.lane.b32.xlu0 %v755, 16
        %v928 = vpop.permute.xlu0 %927
        %931 = vrot.lane.b32.xlu0 %v921, 24
        %v932 = vpop.permute.xlu0 %931
        %v934 = vsel %vm261, %v423, %v924
        %vm935 = vcmask 130048
        %v936 = vsel %vm935, %v934, %v928
        %vm937 = vcmask 195584
        %v938 = vsel %vm937, %v936, %v932
        %939 = vst.msk [vmem:[%s173] sm:$0xff] %vm179, %v938
        %s940 = sand.u32 %s75, 1
        %s941 = scalar_lea.sflag [#allocation4], %s940
        %s942 = sand.u32 %s75, 1
        %s943 = smul.addr %s942, 8
        %s944 = scalar_lea.vmem [#allocation7], %s943
        // Predicated region
        $region37: #{tpu_custom_call.1} parent=27 // pred_check
          %p945 = pneg %p85
        $region38: #{tpu_custom_call.1} parent=27 // pred_check_branch
          %947 = sbr.rel (%p945) target = $region40
        $region39: #{tpu_custom_call.1} parent=27 // pred_region
          %s949 = ssub.s32 128, 128
          %950 = vsyncadd %s941, %s949
          %s951 = smul.addr %s20, 128
          %s952 = scalar_lea.hbm %s2, %s951
          %s954 = sshll.u32 %s944, 4
          %s955 = int_to_ptr.vmem [resolvable:$true] %s954
          %957 = dma.vmem_to_hbm [thread:$0]  %s955, 128, %s952, %s941
        $region40: #{tpu_custom_call.1} parent=27 // pred_fallthru
          _
      $region28: #{tpu_custom_call.1} parent=5 // pred_fallthru
        _
      %p958 = scmp.le.s32.totalorder 2, %s15
      // Predicated region
      $region41: #{tpu_custom_call.1} parent=5 // pred_check
        %p959 = pneg %p958
      $region42: #{tpu_custom_call.1} parent=5 // pred_check_branch
        %961 = sbr.rel (%p959) target = $region44
      $region43: #{tpu_custom_call.1} parent=5 // pred_region
        %s962 = ssub.s32 %s15, 2
        // Predicated region
        $region45: #{tpu_custom_call.1} parent=43 // pred_check
          %p963 = pneg %p91
        $region46: #{tpu_custom_call.1} parent=43 // pred_check_branch
          %965 = sbr.rel (%p963) target = $region48
        $region47: #{tpu_custom_call.1} parent=43 // pred_region
          %s966 = sand.u32 %s76, 1
          %s967 = scalar_lea.sflag [#allocation4], %s966
          %s968 = sand.u32 %s76, 1
          %s969 = smul.addr %s968, 8
          %s970 = scalar_lea.vmem [#allocation7], %s969
          %971 = dma.done %s967, 128
        $region48: #{tpu_custom_call.1} parent=43 // pred_fallthru
          _
      $region44: #{tpu_custom_call.1} parent=5 // pred_fallthru
        _
    $region6: #{tpu_custom_call.1} parent=1 // loop_footer
      %s19 = sadd.s32 1, %s15
    $region7: #{tpu_custom_call.1} parent=1 // loop_footer_branch
      %14 = sbr.rel target = $region3
    $region8: #{tpu_custom_call.1} parent=1 // loop_exit
      _
    %972 = vsyncpa [#allocation3], 1
    %s973 = scalar_lea.sflag [#allocation3], 1
    %974 = vsyncpa %s973, 1
    %975 = vsyncpa [#allocation6], 1
    %976 = vsyncpa [#allocation4], 1
    %s977 = scalar_lea.sflag [#allocation4], 1
    %978 = vsyncpa %s977, 1

</llo_original>
